<compile_context>
chip_gen: v7x
topology: tpu7x:2x2x1
jax: 0.10.0
libtpu: 0.0.40
codegen_flags: <defaults>
</compile_context>

<pallas_src>
import numpy as np
import jax
import jax.numpy as jnp
from jax.experimental import pallas as pl
from jax.experimental.pallas import tpu as pltpu

EPS = 1e-6


def _convnext_upscale_kernel(x_ref, wcat_ref, const_ref, o_ref):
    """One (batch, pixel-tile) grid step.

    x_ref    : (1, C_in, TP)   activations (bf16/f32): channels on sublanes, pixels on lanes
    wcat_ref : (2*CSS, C_in)   rows [0:CSS)  = (mean-centered, gamma-folded convT weight).T
                               rows [CSS:)   = (skip group-mean matrix).T   (same dtype as x)
    const_ref: (CSS, 1)  f32   beta @ W + conv bias (repeated per (kh, kw) sub-pixel)
    o_ref    : (1, CSS, TP)    output: (c_out*s*s) rows, pixels on lanes
    """
    css = o_ref.shape[1]
    c_in = x_ref.shape[1]

    x = x_ref[0]                                     # native dtype -> feeds the MXU directly

    # LayerNorm statistics over the channel (sublane) axis: f32-accumulating reductions,
    # no explicit full-tile f32 copy of the activations.
    inv_c = jnp.float32(1.0 / c_in)
    sum_x = jnp.sum(x, axis=0, keepdims=True, dtype=jnp.float32)        # (1, TP)
    sum_xx = jnp.sum(x * x, axis=0, keepdims=True, dtype=jnp.float32)   # (1, TP)
    mean = sum_x * inv_c
    var = jnp.maximum(sum_xx * inv_c - mean * mean, 0.0)
    rstd = jax.lax.rsqrt(var + EPS)                                     # (1, TP)

    # Single fused MXU matmul (bf16 x bf16 -> f32 on the fast path):
    #   [center(gamma*W) | S].T @ x  ->  (2*CSS, TP)
    yc = jnp.dot(wcat_ref[...], x, preferred_element_type=jnp.float32)

    # Weights are pre-centered on the host, so yc[:css] == (gamma*W).T @ (x - mean).
    # Epilogue: one multiply + two adds on the (CSS, TP) f32 tile, then cast + store.
    out = yc[:css] * rstd + yc[css:] + const_ref[...]
    o_ref[0] = out.astype(o_ref.dtype)


def _vmem_capacity_bytes():
    """Physical VMEM per TensorCore, with a conservative (v7x = 64 MiB) fallback."""
    try:
        cap = getattr(pltpu.get_tpu_info(), "vmem_capacity_bytes", None)
        if cap:
            return int(cap)
    except Exception:
        pass
    return 64 << 20


def _pick_pixel_tile(hw, c_in, css, in_bytes, out_bytes, tp_max, pixel_budget_bytes):
    """Largest lane-dense pixel tile whose VMEM footprint fits the (constant-adjusted) budget."""
    per_pixel = (2 * c_in * in_bytes      # activation stream, double-buffered
                 + 2 * css * out_bytes    # output stream, double-buffered
                 + 4 * css * 4)           # f32 matmul result + epilogue temporaries
    tp = (pixel_budget_bytes // per_pixel) // 128 * 128
    tp = int(max(128, min(tp, tp_max)))
    if hw <= tp:
        return hw        # block == full dim is always legal (even if < 128 lanes)
    return tp            # multiple of 128; pl.cdiv grid masks the tail block


def _split_for_occupancy(tp, hw, batch, min_steps=4):
    """v7x has 2 TensorCores: keep enough 'parallel' grid steps so both cores get work."""
    while batch * pl.cdiv(hw, tp) < min_steps and tp > 128 and tp % 256 == 0:
        tp //= 2
    return tp


def convnext_upscale(x_nchw, gamma, beta, w_conv, b_conv, c_out, s, *,
                     activation_dtype=jnp.bfloat16, tp_max=None, vmem_budget_bytes=None):
    B, C_in, H, W = x_nchw.shape
    ss = s * s
    css = c_out * ss
    g = C_in // c_out
    HW = H * W

    vmem_cap = _vmem_capacity_bytes()
    big_vmem = vmem_cap >= (96 << 20)                    # v5e / v6e (128 MiB) vs v7x (64 MiB)
    if tp_max is None:
        tp_max = 4096 if big_vmem else 2048
    if vmem_budget_bytes is None:
        vmem_budget_bytes = (48 << 20) if big_vmem else (24 << 20)

    # --- Input: NCHW consumed directly (free reshape, no HBM transpose); bf16 halves the
    #     HBM->VMEM bytes of the activation stream (LN stats / matmul accumulate in f32).
    x_flat = x_nchw.reshape(B, C_in, HW).astype(activation_dtype)
    out_dtype = activation_dtype
    weight_dtype = activation_dtype      # f32 weight path kept for activation_dtype=float32

    # --- Fold LayerNorm affine + conv bias into the tiny VMEM-resident weights, and PRE-CENTER
    #     the gamma-folded columns: W_c.T @ x == (gamma*W).T @ (x - mean), so no per-pixel
    #     mean-correction term is needed in the kernel.
    w_mat = w_conv.reshape(C_in, css).astype(jnp.float32)            # row order (c_out, kh, kw)
    w_gamma = w_mat * gamma.astype(jnp.float32)[:, None]
    w_centered = w_gamma - jnp.sum(w_gamma, axis=0, keepdims=True) / C_in
    const = (beta.astype(jnp.float32) @ w_mat
             + jnp.repeat(b_conv.astype(jnp.float32), ss))[:, None]  # (CSS, 1): beta@W + bias

    # Skip matrix: S[ci, co*ss + k] = 1/g  iff  ci // g == co  (group-mean, repeated s*s times).
    ci = np.arange(C_in)
    s_np = np.zeros((C_in, css), np.float32)
    for k in range(ss):
        s_np[ci, (ci // g) * ss + k] = 1.0 / g
    wcat_t = jnp.concatenate([w_centered, jnp.asarray(s_np)], axis=1).T.astype(weight_dtype)

    in_bytes = np.dtype(activation_dtype).itemsize
    out_bytes = np.dtype(out_dtype).itemsize
    w_bytes = np.dtype(weight_dtype).itemsize

    # Resident constants (conservatively assume double-buffered) are subtracted from the pixel
    # budget BEFORE picking the tile (critical on v7x's 64 MiB VMEM).
    const_resident = 2 * (2 * css * C_in * w_bytes + css * 4)
    # NOTE: pipeline_mode=pl.Buffered(1) on the constant inputs would halve const_resident
    # further; left out for lowering robustness.
    pixel_budget = max(int(vmem_budget_bytes) - const_resident, 4 << 20)

    tp = _pick_pixel_tile(HW, C_in, css, in_bytes, out_bytes, tp_max, pixel_budget)
    tp = _split_for_occupancy(tp, HW, B)

    per_pixel = (2 * C_in * in_bytes + 2 * css * out_bytes + 4 * css * 4)
    vmem_needed = tp * per_pixel + const_resident + (4 << 20)
    vmem_limit = int(min(max(vmem_needed, 16 << 20), (vmem_cap * 3) // 4))

    grid = (B, pl.cdiv(HW, tp))   # no divisibility assert: tail tile is masked by Pallas

    cost = pl.CostEstimate(
        flops=int(2 * (2 * css) * C_in * B * HW + 4 * css * B * HW),
        transcendentals=int(B * HW),
        bytes_accessed=int(B * HW * (C_in * in_bytes + css * out_bytes)
                           + 2 * css * C_in * w_bytes + css * 4),
    )

    out_flat = pl.pallas_call(
        _convnext_upscale_kernel,
        out_shape=jax.ShapeDtypeStruct((B, css, HW), out_dtype),
        grid_spec=pltpu.PrefetchScalarGridSpec(
            num_scalar_prefetch=0,
            grid=grid,
            in_specs=[
                pl.BlockSpec((1, C_in, tp), lambda b, p: (b, 0, p)),   # activations (lane-dense)
                pl.BlockSpec((2 * css, C_in), lambda b, p: (0, 0)),    # [center(gamma*W)|S].T
                pl.BlockSpec((css, 1), lambda b, p: (0, 0)),           # beta@W + bias
            ],
            out_specs=pl.BlockSpec((1, css, tp), lambda b, p: (b, 0, p)),  # lane-dense stores
        ),
        compiler_params=pltpu.CompilerParams(
            dimension_semantics=("parallel", "parallel"),
            vmem_limit_bytes=vmem_limit,
        ),
        cost_estimate=cost,
    )(x_flat, wcat_t, const)

    # TODO(synk): this depth-to-space still round-trips the (s^2-larger) output through HBM on
    # the XLA side; for production, fuse it into the consumer (accept the (B, c_out*s*s, H*W)
    # layout) or move the sub-pixel relayout in-kernel with a row-aligned output layout.
    y = out_flat.reshape(B, c_out, s, s, H, W)
    y = jnp.transpose(y, (0, 1, 4, 2, 5, 3)).reshape(B, c_out, H * s, W * s)
    return y


def decoder_module_forward(x_nchw, gamma, beta, w_conv, b_conv, c_out, s, *,
                           num_blocks=0, **kwargs):
    """DecoderModule.forward = ConvNextUpScale followed by `num_blocks` ConvNext blocks."""
    # TODO(synk): ConvNext residual blocks (num_blocks > 0) not implemented as Pallas kernels.
    assert num_blocks == 0, "only the ConvNextUpScale stage (num_blocks=0) is implemented"
    return convnext_upscale(x_nchw, gamma, beta, w_conv, b_conv, c_out, s, **kwargs)


def reference(x, gamma, beta, w_conv, b_conv, c_out, s):
    """Pure-JAX (f32) reference matching the PyTorch module semantics."""
    B, C_in, H, W = x.shape
    g = C_in // c_out
    # SkipConnection (spatial_factor > 1): channel group-mean, then spatial repeat
    skip = x.reshape(B, c_out, g, H, W).mean(axis=2)
    skip = jnp.repeat(jnp.repeat(skip, s, axis=2), s, axis=3)
    # LayerNormChannelOnly
    xt = jnp.transpose(x, (0, 2, 3, 1))
    mean = xt.mean(-1, keepdims=True)
    var = ((xt - mean) ** 2).mean(-1, keepdims=True)
    xn = (xt - mean) / jnp.sqrt(var + EPS) * gamma + beta
    # ConvTranspose2d with kernel_size == stride == s
    y = jnp.einsum('bhwc,cokl->bhwokl', xn, w_conv) + b_conv[None, None, None, :, None, None]
    y = jnp.transpose(y, (0, 3, 1, 4, 2, 5)).reshape(B, c_out, H * s, W * s)
    return y + skip


if __name__ == "__main__":
    B, C_in, C_out, S_FACTOR, H, W = 2, 8, 4, 2, 16, 16

    key = jax.random.PRNGKey(0)
    kx, kg, kb, kw, kbias = jax.random.split(key, 5)

    x = jax.random.normal(kx, (B, C_in, H, W), jnp.float32)
    gamma = 1.0 + 0.1 * jax.random.normal(kg, (C_in,), jnp.float32)   # LN affine
    beta = 0.1 * jax.random.normal(kb, (C_in,), jnp.float32)
    w_conv = 0.3 * jax.random.normal(kw, (C_in, C_out, S_FACTOR, S_FACTOR), jnp.float32)
    b_conv = 0.1 * jax.random.normal(kbias, (C_out,), jnp.float32)

    ref = reference(x, gamma, beta, w_conv, b_conv, C_out, S_FACTOR)

    # 1) f32 activations/weights: tight check that the folded/fused kernel math matches.
    out_f32 = decoder_module_forward(x, gamma, beta, w_conv, b_conv, C_out, S_FACTOR,
                                     num_blocks=0, activation_dtype=jnp.float32)
    out_f32 = jax.block_until_ready(out_f32)
    np.testing.assert_allclose(np.asarray(out_f32), np.asarray(ref), rtol=1e-4, atol=1e-4)

    # 2) bf16 activation/weight I/O (default fast path): tolerance loosened per the bf16
    #    quantization of the activation stream / weights (LN stats + matmul accumulate in f32).
    out_bf16 = decoder_module_forward(x, gamma, beta, w_conv, b_conv, C_out, S_FACTOR,
                                      num_blocks=0)
    out_bf16 = jax.block_until_ready(out_bf16)
    assert out_bf16.shape == (B, C_out, H * S_FACTOR, W * S_FACTOR)
    np.testing.assert_allclose(np.asarray(out_bf16.astype(jnp.float32)), np.asarray(ref),
                               rtol=3e-2, atol=3e-2)

    print("KERNEL_OK")
</pallas_src>

<mosaic_0001>
module attributes {stable_mosaic.version = 11 : i64} {
  func.func @_convnext_upscale_kernel(%arg0: i32, %arg1: i32, %arg2: memref<1x8x128xf32, #tpu.memory_space<vmem>>, %arg3: memref<32x8xf32, #tpu.memory_space<vmem>>, %arg4: memref<16x1xf32, #tpu.memory_space<vmem>>, %arg5: memref<1x16x128xf32, #tpu.memory_space<vmem>>) attributes {dimension_semantics = [#tpu.dimension_semantics<parallel>, #tpu.dimension_semantics<parallel>], iteration_bounds = array<i64: 2, 2>, scalar_prefetch = 0 : i64, scratch_operands = 0 : i64, tpu.core_type = #tpu.core_type<tc>, window_params = [{transform_indices = @transform_0, window_bounds = array<i64: 1, 8, 128>}, {pipeline_mode = #tpu.pipeline_mode<synchronous>, transform_indices = @transform_1, window_bounds = array<i64: 32, 8>}, {pipeline_mode = #tpu.pipeline_mode<synchronous>, transform_indices = @transform_2, window_bounds = array<i64: 16, 1>}, {transform_indices = @transform_3, window_bounds = array<i64: 1, 16, 128>}]} {
    %c0 = arith.constant 0 : index
    %c0_0 = arith.constant 0 : index
    %c0_1 = arith.constant 0 : index
    %0 = vector.load %arg2[%c0, %c0_0, %c0_1] : memref<1x8x128xf32, #tpu.memory_space<vmem>>, vector<1x8x128xf32>
    %1 = vector.shape_cast %0 : vector<1x8x128xf32> to vector<8x128xf32>
    %cst = arith.constant dense<0.000000e+00> : vector<128xf32>
    %2 = vector.multi_reduction <add>, %1, %cst [0] : vector<8x128xf32> to vector<128xf32>
    %3 = vector.shape_cast %2 : vector<128xf32> to vector<1x128xf32>
    %4 = arith.mulf %1, %1 : vector<8x128xf32>
    %cst_2 = arith.constant dense<0.000000e+00> : vector<128xf32>
    %5 = vector.multi_reduction <add>, %4, %cst_2 [0] : vector<8x128xf32> to vector<128xf32>
    %6 = vector.shape_cast %5 : vector<128xf32> to vector<1x128xf32>
    %cst_3 = arith.constant 1.250000e-01 : f32
    %7 = vector.broadcast %cst_3 : f32 to vector<1x128xf32>
    %8 = arith.mulf %3, %7 : vector<1x128xf32>
    %cst_4 = arith.constant 1.250000e-01 : f32
    %9 = vector.broadcast %cst_4 : f32 to vector<1x128xf32>
    %10 = arith.mulf %6, %9 : vector<1x128xf32>
    %11 = arith.mulf %8, %8 : vector<1x128xf32>
    %12 = arith.subf %10, %11 : vector<1x128xf32>
    %cst_5 = arith.constant 0.000000e+00 : f32
    %13 = vector.broadcast %cst_5 : f32 to vector<1x128xf32>
    %14 = arith.maximumf %12, %13 : vector<1x128xf32>
    %cst_6 = arith.constant 9.99999997E-7 : f32
    %15 = vector.broadcast %cst_6 : f32 to vector<1x128xf32>
    %16 = arith.addf %14, %15 : vector<1x128xf32>
    %17 = math.rsqrt %16 : vector<1x128xf32>
    %c0_7 = arith.constant 0 : index
    %c0_8 = arith.constant 0 : index
    %18 = vector.load %arg3[%c0_7, %c0_8] : memref<32x8xf32, #tpu.memory_space<vmem>>, vector<32x8xf32>
    %cst_9 = arith.constant dense<0.000000e+00> : vector<32x128xf32>
    %19 = tpu.matmul %18, %1, %cst_9 {dimension_numbers = #tpu.dot_dimension_numbers<[1], [0], [0], [1], [0, 0, 1, 1], [], []>} : vector<32x8xf32>, vector<8x128xf32>, vector<32x128xf32> -> vector<32x128xf32>
    %20 = vector.extract_strided_slice %19 {offsets = [0, 0], sizes = [16, 128], strides = [1, 1]} : vector<32x128xf32> to vector<16x128xf32>
    %21 = vector.broadcast %17 : vector<1x128xf32> to vector<16x128xf32>
    %22 = arith.mulf %20, %21 : vector<16x128xf32>
    %23 = vector.extract_strided_slice %19 {offsets = [16, 0], sizes = [16, 128], strides = [1, 1]} : vector<32x128xf32> to vector<16x128xf32>
    %24 = arith.addf %22, %23 : vector<16x128xf32>
    %c0_10 = arith.constant 0 : index
    %c0_11 = arith.constant 0 : index
    %25 = vector.load %arg4[%c0_10, %c0_11] : memref<16x1xf32, #tpu.memory_space<vmem>>, vector<16x1xf32>
    %26 = vector.broadcast %25 : vector<16x1xf32> to vector<16x128xf32>
    %27 = arith.addf %24, %26 : vector<16x128xf32>
    %c0_12 = arith.constant 0 : index
    %c0_13 = arith.constant 0 : index
    %c0_14 = arith.constant 0 : index
    %28 = vector.load %arg5[%c0_12, %c0_13, %c0_14] : memref<1x16x128xf32, #tpu.memory_space<vmem>>, vector<1x16x128xf32>
    %29 = vector.shape_cast %28 : vector<1x16x128xf32> to vector<16x128xf32>
    %30 = vector.shape_cast %27 : vector<16x128xf32> to vector<1x16x128xf32>
    tpu.vector_store %arg5[%c0_12, %c0_13, %c0_14], %30 {strides = array<i32>} : memref<1x16x128xf32, #tpu.memory_space<vmem>>, vector<1x16x128xf32>,
    return
  }
  func.func @transform_0(%arg0: i32, %arg1: i32) -> (i32, i32, i32) {
    %c0_i32 = arith.constant 0 : i32
    %c0_i32_0 = arith.constant 0 : i32
    return %arg0, %c0_i32, %arg1 : i32, i32, i32
  }
  func.func @transform_1(%arg0: i32, %arg1: i32) -> (i32, i32) {
    %c0_i32 = arith.constant 0 : i32
    %c0_i32_0 = arith.constant 0 : i32
    %c0_i32_1 = arith.constant 0 : i32
    return %c0_i32, %c0_i32_0 : i32, i32
  }
  func.func @transform_2(%arg0: i32, %arg1: i32) -> (i32, i32) {
    %c0_i32 = arith.constant 0 : i32
    %c0_i32_0 = arith.constant 0 : i32
    %c0_i32_1 = arith.constant 0 : i32
    return %c0_i32, %c0_i32_0 : i32, i32
  }
  func.func @transform_3(%arg0: i32, %arg1: i32) -> (i32, i32, i32) {
    %c0_i32 = arith.constant 0 : i32
    %c0_i32_0 = arith.constant 0 : i32
    return %arg0, %c0_i32, %arg1 : i32, i32, i32
  }
}

</mosaic_0001>

<llo_original>
// kernel: tpu_custom_call.1
$region0: #{tpu_custom_call.1}
  #allocation0 [shape = 'u32[]', space=smem, size = 0x4, offset = 0x4, fixed_abs, tag = 'smem constant byte address 0x4 - core index']
  #allocation1 [shape = 'u32[144,128]{1,0:T(1,128)}', space=vmem, size = 0x12000, scoped, tag = 'internal scratch']
  %s0 = inlined_call_operand.vmem [shape: f32[2,8,256], index: 0, kind: input, shape index: {}]
  %s1 = inlined_call_operand.vmem [shape: f32[32,8], index: 1, kind: input, shape index: {}]
  %s2 = inlined_call_operand.vmem [shape: f32[16,1], index: 2, kind: input, shape index: {}]
  %s3 = inlined_call_operand.hbm [shape: f32[2,16,256], index: 3, kind: output, shape index: {}]
  %s4 = sld [smem:[#allocation0]]
  $region45: #{tpu_custom_call.1} parent=0
    _
  %s6 = ssub.s32 1, %s4
  %s7 = scalar_select 0, %s6, %s4
  $region1: #{tpu_custom_call.1} parent=0
    #allocation2 [shape = 'u8[16384]{0}', space=vmem, size = 0x4000, scoped, tag = 'output window, operand 0']
    #allocation3 [shape = 's32[2]{0}', space=sflag, size = 0x8, scoped, tag = 'scoped memory for tpu_custom_call.1']
    %8 = vsyncpa [#allocation3], 0
    %s9 = scalar_lea.sflag [#allocation3], 1
    %10 = vsyncpa %s9, 0
    loop: start=0, step=1, limit=6
    $region2: #{tpu_custom_call.1} parent=1 // loop_pre_header
      _
    $region3: #{tpu_custom_call.1} parent=1 // loop_header
      %s12 = sphi 0, %s16
      %p13 = scmp.ge.s32.totalorder %s12, 6
      %s19 = sphi 0, %s31
      %s20 = sphi 0, %s27
      %s21 = sphi 0, %s19
      %s22 = sphi 0, %s20
      %s23 = sphi 0, %s21
      %s24 = sphi 0, %s22
      %s36 = sphi 0, %s38
      %s39 = sphi 0, %s36
      %s40 = sphi 0, %s39
      %s56 = sphi 0, %s40
      %s60 = sphi 0, %s60
      %s62 = sphi 0, %s60
      %s63 = sphi 0, %s62
      %s77 = sphi 0, %s63
      %s81 = sphi 0, %s81
      %s83 = sphi 0, %s81
      %s84 = sphi 0, %s83
      %s98 = sphi 0, %s84
      %s106 = sphi 0, %s108
      %s109 = sphi 0, %s106
      %s110 = sphi 0, %s109
      %s126 = sphi 0, %s110
    $region4: #{tpu_custom_call.1} parent=1 // loop_header_branch
      %15 = sbr.rel (%p13) target = $region8
    $region5: #{tpu_custom_call.1} parent=1 // loop_body
      %s17 = ssub.s32 %s12, 1
      %s18 = ssub.s32 %s12, 2
      %s25 = sadd.s32 1, %s20
      %p26 = scmp.ge.s32.totalorder %s25, 2
      %s27 = scalar_select %p26, 0, %s25
      %s28 = sadd.s32 1, %s19
      %s29 = scalar_select %p26, %s28, %s19
      %p30 = scmp.ge.s32.totalorder %s29, 2
      %s31 = scalar_select %p30, 0, %s29
      %s32 = ssub.s32 %s19, %s31
      %s33 = ssub.s32 %s20, %s27
      %s34 = sor.u32 %s32, %s33
      %p35 = scmp.eq.s32.totalorder %s34, 0
      %s37 = sadd.s32 %s36, 1
      %s38 = scalar_select %p35, %s36, %s37
      %p41 = pneg %p35
      %p42 = scmp.eq.s32.totalorder %s12, 3
      %p43 = por %p41, %p42
      %p44 = scmp.ne.s32.totalorder %s36, %s39
      %p45 = scmp.eq.s32.totalorder %s12, 0
      %p46 = por %p44, %p45
      %p47 = scmp.ne.s32.totalorder %s36, %s39
      %p48 = scmp.eq.s32.totalorder %s17, 3
      %p49 = por %p47, %p48
      %p50 = scmp.ne.s32.totalorder %s39, %s40
      %p51 = scmp.eq.s32.totalorder %s17, 0
      %p52 = por %p50, %p51
      %p53 = scmp.ne.s32.totalorder %s39, %s40
      %p54 = scmp.eq.s32.totalorder %s18, 3
      %p55 = por %p53, %p54
      %p57 = scmp.ne.s32.totalorder %s40, %s56
      %p58 = scmp.eq.s32.totalorder %s18, 0
      %p59 = por %p57, %p58
      %s61 = sadd.s32 %s60, 1
      %p64 = scmp.eq.s32.totalorder %s12, 3
      %p65 = scmp.ne.s32.totalorder %s60, %s62
      %p66 = scmp.eq.s32.totalorder %s12, 0
      %p67 = por %p65, %p66
      %p68 = scmp.ne.s32.totalorder %s60, %s62
      %p69 = scmp.eq.s32.totalorder %s17, 3
      %p70 = por %p68, %p69
      %p71 = scmp.ne.s32.totalorder %s62, %s63
      %p72 = scmp.eq.s32.totalorder %s17, 0
      %p73 = por %p71, %p72
      %p74 = scmp.ne.s32.totalorder %s62, %s63
      %p75 = scmp.eq.s32.totalorder %s18, 3
      %p76 = por %p74, %p75
      %p78 = scmp.ne.s32.totalorder %s63, %s77
      %p79 = scmp.eq.s32.totalorder %s18, 0
      %p80 = por %p78, %p79
      %s82 = sadd.s32 %s81, 1
      %p85 = scmp.eq.s32.totalorder %s12, 3
      %p86 = scmp.ne.s32.totalorder %s81, %s83
      %p87 = scmp.eq.s32.totalorder %s12, 0
      %p88 = por %p86, %p87
      %p89 = scmp.ne.s32.totalorder %s81, %s83
      %p90 = scmp.eq.s32.totalorder %s17, 3
      %p91 = por %p89, %p90
      %p92 = scmp.ne.s32.totalorder %s83, %s84
      %p93 = scmp.eq.s32.totalorder %s17, 0
      %p94 = por %p92, %p93
      %p95 = scmp.ne.s32.totalorder %s83, %s84
      %p96 = scmp.eq.s32.totalorder %s18, 3
      %p97 = por %p95, %p96
      %p99 = scmp.ne.s32.totalorder %s84, %s98
      %p100 = scmp.eq.s32.totalorder %s18, 0
      %p101 = por %p99, %p100
      %s102 = ssub.s32 %s19, %s31
      %s103 = ssub.s32 %s20, %s27
      %s104 = sor.u32 %s102, %s103
      %p105 = scmp.eq.s32.totalorder %s104, 0
      %s107 = sadd.s32 %s106, 1
      %s108 = scalar_select %p105, %s106, %s107
      %p111 = pneg %p105
      %p112 = scmp.eq.s32.totalorder %s12, 3
      %p113 = por %p111, %p112
      %p114 = scmp.ne.s32.totalorder %s106, %s109
      %p115 = scmp.eq.s32.totalorder %s12, 0
      %p116 = por %p114, %p115
      %p117 = scmp.ne.s32.totalorder %s106, %s109
      %p118 = scmp.eq.s32.totalorder %s17, 3
      %p119 = por %p117, %p118
      %p120 = scmp.ne.s32.totalorder %s109, %s110
      %p121 = scmp.eq.s32.totalorder %s17, 0
      %p122 = por %p120, %p121
      %p123 = scmp.ne.s32.totalorder %s109, %s110
      %p124 = scmp.eq.s32.totalorder %s18, 3
      %p125 = por %p123, %p124
      %p127 = scmp.ne.s32.totalorder %s110, %s126
      %p128 = scmp.eq.s32.totalorder %s18, 0
      %p129 = por %p127, %p128
      %p130 = scmp.le.s32.totalorder 1, %s12
      %p131 = scmp.lt.s32.totalorder %s12, 5
      %p132 = pnand %p130, %p131
      %p133 = pneg %p132
      // Predicated region
      $region9: #{tpu_custom_call.1} parent=5 // pred_check
        _
      $region10: #{tpu_custom_call.1} parent=5 // pred_check_branch
        %135 = sbr.rel (%p132) target = $region12
      $region11: #{tpu_custom_call.1} parent=5 // pred_region
        %s136 = ssub.s32 %s12, 1
        // Predicated region
        $region13: #{tpu_custom_call.1} parent=11 // pred_check
          %p137 = pneg %p73
        $region14: #{tpu_custom_call.1} parent=11 // pred_check_branch
          %139 = sbr.rel (%p137) target = $region16
        $region15: #{tpu_custom_call.1} parent=11 // pred_region
          _
        $region16: #{tpu_custom_call.1} parent=11 // pred_fallthru
          _
        // Predicated region
        $region17: #{tpu_custom_call.1} parent=11 // pred_check
          %p140 = pneg %p94
        $region18: #{tpu_custom_call.1} parent=11 // pred_check_branch
          %142 = sbr.rel (%p140) target = $region20
        $region19: #{tpu_custom_call.1} parent=11 // pred_region
          _
        $region20: #{tpu_custom_call.1} parent=11 // pred_fallthru
          _
      $region12: #{tpu_custom_call.1} parent=5 // pred_fallthru
        _
      %p143 = scmp.lt.s32.totalorder %s12, 4
      // Predicated region
      $region21: #{tpu_custom_call.1} parent=5 // pred_check
        %p144 = pneg %p143
      $region22: #{tpu_custom_call.1} parent=5 // pred_check_branch
        %146 = sbr.rel (%p144) target = $region24
      $region23: #{tpu_custom_call.1} parent=5 // pred_region
        // Predicated region
        $region25: #{tpu_custom_call.1} parent=23 // pred_check
          %p147 = pneg %p46
        $region26: #{tpu_custom_call.1} parent=23 // pred_check_branch
          %149 = sbr.rel (%p147) target = $region28
        $region27: #{tpu_custom_call.1} parent=23 // pred_region
          %p150 = scmp.lt.s32.totalorder %s19, 1
          %s151 = scalar_select %p150, %s19, 1
          %p152 = scmp.lt.s32.totalorder %s20, 1
          %s153 = scalar_select %p152, %s20, 1
          %s154 = smul.addr %s151, 2
          %s155 = sadd.s32 %s153, %s154
          %s156 = smul.addr %s155, 8
          %s157 = scalar_lea.vmem %s0, %s156
        $region28: #{tpu_custom_call.1} parent=23 // pred_fallthru
          _
      $region24: #{tpu_custom_call.1} parent=5 // pred_fallthru
        _
      %p158 = scmp.le.s32.totalorder 1, %s12
      %p159 = scmp.lt.s32.totalorder %s12, 5
      %p160 = pnand %p158, %p159
      %p161 = pneg %p160
      // Predicated region
      $region29: #{tpu_custom_call.1} parent=5 // pred_check
        _
      $region30: #{tpu_custom_call.1} parent=5 // pred_check_branch
        %163 = sbr.rel (%p160) target = $region32
      $region31: #{tpu_custom_call.1} parent=5 // pred_region
        %s164 = ssub.s32 %s12, 1
        %p165 = scmp.lt.s32.totalorder %s21, 1
        %s166 = scalar_select %p165, %s21, 1
        %p167 = scmp.lt.s32.totalorder %s22, 1
        %s168 = scalar_select %p167, %s22, 1
        %s169 = smul.addr %s166, 2
        %s170 = sadd.s32 %s168, %s169
        %s171 = smul.addr %s170, 8
        %s172 = scalar_lea.vmem %s0, %s171
        %p173 = pneg %p52
        %p174 = pneg %p49
        %p175 = pneg %p73
        %p176 = pneg %p70
        %p177 = pneg %p94
        %p178 = pneg %p91
        %p179 = pneg %p122
        %p180 = pneg %p119
        %s181 = sand.u32 %s109, 1
        %s182 = scalar_lea.sflag [#allocation3], %s181
        %s183 = sand.u32 %s109, 1
        %s184 = smul.addr %s183, 16
        %s185 = scalar_lea.vmem [#allocation2], %s184
        %p186 = scmp.lt.s32.totalorder %s21, 1
        %s187 = scalar_select %p186, %s21, 1
        %p188 = scmp.lt.s32.totalorder %s22, 1
        %s189 = scalar_select %p188, %s22, 1
        %s190 = smul.addr %s187, 2
        %s191 = sadd.s32 %s189, %s190
        %s192 = smul.addr %s191, 8
        %s193 = scalar_lea.vmem %s0, %s192
        %v194 = vld [vmem:[%s193] sm:$0xff]
        %v195 = vrot.slane %v194, 4
        %v196 = vadd.f32 %v194, %v195
        %v197 = vrot.slane %v196, 2
        %v198 = vadd.f32 %v196, %v197
        %v199 = vrot.slane %v198, 1
        %v200 = vadd.f32 %v198, %v199
        %v201 = vmul.f32 %v194, %v194
        %v202 = vrot.slane %v201, 4
        %v203 = vadd.f32 %v201, %v202
        %v204 = vrot.slane %v203, 2
        %v205 = vadd.f32 %v203, %v204
        %v206 = vrot.slane %v205, 1
        %v207 = vadd.f32 %v205, %v206
        %v208 = vmul.f32 %v200, 0.125
        %v209 = vmul.f32 %v207, 0.125
        %v210 = vmul.f32 %v208, %v208
        %v211 = vsub.f32 %v209, %v210
        %v212 = vmax.f32 %v211, 0.0
        %v213 = vadd.f32 %v212, 1e-06
        %v214 = vrsqrt.pop %v213
        %v215 = vld [vmem:[%s1] sm:$0xff]
        %v216 = vld [vmem:[%s1 + $0x8] sm:$0xff]
        %v217 = vld [vmem:[%s1 + $0x10] sm:$0xff]
        %v218 = vld [vmem:[%s1 + $0x18] sm:$0xff]
        %vm219 = vcmask 64512
        %v221 = vsel %vm219, %v215, 0
        %v224 = vsel %vm219, %v216, 0
        %v227 = vsel %vm219, %v217, 0
        %v230 = vsel %vm219, %v218, 0
        %232 = vmatprep.subr.mxu0 0.0
        %233 = vmatpush1.msra.mxu0 %v194
        %234 = vmatprep.subr.mxu0 0.0
        %235 = vmatpush1.msra.mxu0 0.0
        %236 = vmatprep.subr.mxu0 0.0
        %237 = vmatpush1.msra.mxu0 0.0
        %238 = vmatprep.subr.mxu0 0.0
        %239 = vmatpush1.msra.mxu0 0.0
        %240 = vmatprep.subr.mxu0 0.0
        %241 = vmatpush1.msra.mxu0 0.0
        %242 = vmatprep.subr.mxu0 0.0
        %243 = vmatpush1.msra.mxu0 0.0
        %244 = vmatprep.subr.mxu0 0.0
        %245 = vmatpush1.msra.mxu0 0.0
        %246 = vmatprep.subr.mxu0 0.0
        %247 = vmatpush1.msra.mxu0 0.0
        %248 = vmatprep.subr.mxu0 0.0
        %249 = vmatpush1.msra.mxu0 0.0
        %250 = vmatprep.subr.mxu0 0.0
        %251 = vmatpush1.msra.mxu0 0.0
        %252 = vmatprep.subr.mxu0 0.0
        %253 = vmatpush1.msra.mxu0 0.0
        %254 = vmatprep.subr.mxu0 0.0
        %255 = vmatpush1.msra.mxu0 0.0
        %256 = vmatprep.subr.mxu0 0.0
        %257 = vmatpush1.msra.mxu0 0.0
        %258 = vmatprep.subr.mxu0 0.0
        %259 = vmatpush1.msra.mxu0 0.0
        %260 = vmatprep.subr.mxu0 0.0
        %261 = vmatpush1.msra.mxu0 0.0
        %262 = vmatprep.subr.mxu0 0.0
        %263 = vmatpush1.msra.mxu0 0.0
        %264 = vmatprep.subr.mxu0 0.0
        %265 = vmatpush1.msra.mxu0 0.0
        %266 = vmatprep.subr.mxu0 0.0
        %267 = vmatpush1.msra.mxu0 0.0
        %268 = vmatprep.subr.mxu0 0.0
        %269 = vmatpush1.msra.mxu0 0.0
        %270 = vmatprep.subr.mxu0 0.0
        %271 = vmatpush1.msra.mxu0 0.0
        %272 = vmatprep.subr.mxu0 0.0
        %273 = vmatpush1.msra.mxu0 0.0
        %274 = vmatprep.subr.mxu0 0.0
        %275 = vmatpush1.msra.mxu0 0.0
        %276 = vmatprep.subr.mxu0 0.0
        %277 = vmatpush1.msra.mxu0 0.0
        %278 = vmatprep.subr.mxu0 0.0
        %279 = vmatpush1.msra.mxu0 0.0
        %280 = vmatprep.subr.mxu0 0.0
        %281 = vmatpush1.msra.mxu0 0.0
        %282 = vmatprep.subr.mxu0 0.0
        %283 = vmatpush1.msra.mxu0 0.0
        %284 = vmatprep.subr.mxu0 0.0
        %285 = vmatpush1.msra.mxu0 0.0
        %286 = vmatprep.subr.mxu0 0.0
        %287 = vmatpush1.msra.mxu0 0.0
        %288 = vmatprep.subr.mxu0 0.0
        %289 = vmatpush1.msra.mxu0 0.0
        %290 = vmatprep.subr.mxu0 0.0
        %291 = vmatpush1.msra.mxu0 0.0
        %292 = vmatprep.subr.mxu0 0.0
        %293 = vmatpush1.msra.mxu0 0.0
        %294 = vmatprep.subr.mxu0 0.0
        %295 = vmatpush1.msra.mxu0 0.0
        %296 = vmatprep.mubr.f32.mxu0 0.0
        %297 = vmatmul.mubr.f32.gmra.mrb[0].mxu0 %v221
        %v298 = vpop.f32.mrb[0].mxu0
        %v299 = vadd.f32 0.0, %v298
        %v300 = vpop.f32.mrb[0].mxu0
        %301 = vmatprep.mubr.f32.mxu0 0.0
        %302 = vmatmul.mubr.f32.gmra.mrb[0].mxu0 %v224
        %v303 = vpop.f32.mrb[0].mxu0
        %v304 = vadd.f32 0.0, %v303
        %v305 = vpop.f32.mrb[0].mxu0
        %306 = vmatprep.mubr.f32.mxu0 0.0
        %307 = vmatmul.mubr.f32.gmra.mrb[0].mxu0 %v227
        %v308 = vpop.f32.mrb[0].mxu0
        %v309 = vadd.f32 0.0, %v308
        %v310 = vpop.f32.mrb[0].mxu0
        %311 = vmatprep.mubr.f32.mxu0 0.0
        %312 = vmatmul.mubr.f32.gmra.mrb[0].mxu0 %v230
        %v313 = vpop.f32.mrb[0].mxu0
        %v314 = vadd.f32 0.0, %v313
        %v315 = vpop.f32.mrb[0].mxu0
        %316 = vdwg.mxu0
        %v317 = vmul.f32 %v299, %v214
        %v318 = vmul.f32 %v304, %v214
        %v319 = vadd.f32 %v317, %v309
        %v320 = vadd.f32 %v318, %v314
        %v321 = vld [vmem:[%s2] sm:$0xff]
        %v322 = vld [vmem:[%s2 + $0x8] sm:$0xff]
        %324 = vset.pattern.permute.xlu0 0
        %325 = vperm.xlu0 %324, %v321
        %v326 = vpop.permute.xlu0 %325
        %329 = vset.pattern.permute.xlu0 0
        %330 = vperm.xlu0 %329, %v322
        %v331 = vpop.permute.xlu0 %330
        %v333 = vadd.f32 %v319, %v326
        %v334 = vadd.f32 %v320, %v331
        %335 = vst [vmem:[%s185] sm:$0xff] %v333
        %336 = vst [vmem:[%s185 + $0x8] sm:$0xff] %v334
        %s337 = sand.u32 %s109, 1
        %s338 = scalar_lea.sflag [#allocation3], %s337
        %s339 = sand.u32 %s109, 1
        %s340 = smul.addr %s339, 16
        %s341 = scalar_lea.vmem [#allocation2], %s340
        // Predicated region
        $region33: #{tpu_custom_call.1} parent=31 // pred_check
          %p342 = pneg %p119
        $region34: #{tpu_custom_call.1} parent=31 // pred_check_branch
          %344 = sbr.rel (%p342) target = $region36
        $region35: #{tpu_custom_call.1} parent=31 // pred_region
          %s346 = ssub.s32 256, 256
          %347 = vsyncadd %s338, %s346
          %s348 = smul.addr %s21, 4
          %s349 = sadd.s32 %s22, %s348
          %s350 = smul.addr %s349, 128
          %s351 = scalar_lea.hbm %s3, %s350
          %s352 = sshll.u32 %s341, 4
          %s353 = int_to_ptr.vmem [resolvable:$true] %s352
          %358 = dma.vmem_to_hbm [thread:$0]  %s353, 256, %s351, %s338, 128, 256, 8
        $region36: #{tpu_custom_call.1} parent=31 // pred_fallthru
          _
      $region32: #{tpu_custom_call.1} parent=5 // pred_fallthru
        _
      %p359 = scmp.le.s32.totalorder 2, %s12
      // Predicated region
      $region37: #{tpu_custom_call.1} parent=5 // pred_check
        %p360 = pneg %p359
      $region38: #{tpu_custom_call.1} parent=5 // pred_check_branch
        %362 = sbr.rel (%p360) target = $region40
      $region39: #{tpu_custom_call.1} parent=5 // pred_region
        %s363 = ssub.s32 %s12, 2
        // Predicated region
        $region41: #{tpu_custom_call.1} parent=39 // pred_check
          %p364 = pneg %p125
        $region42: #{tpu_custom_call.1} parent=39 // pred_check_branch
          %366 = sbr.rel (%p364) target = $region44
        $region43: #{tpu_custom_call.1} parent=39 // pred_region
          %s367 = sand.u32 %s110, 1
          %s368 = scalar_lea.sflag [#allocation3], %s367
          %s369 = sand.u32 %s110, 1
          %s370 = smul.addr %s369, 16
          %s371 = scalar_lea.vmem [#allocation2], %s370
          %372 = dma.done %s368, 256
        $region44: #{tpu_custom_call.1} parent=39 // pred_fallthru
          _
      $region40: #{tpu_custom_call.1} parent=5 // pred_fallthru
        _
    $region6: #{tpu_custom_call.1} parent=1 // loop_footer
      %s16 = sadd.s32 1, %s12
    $region7: #{tpu_custom_call.1} parent=1 // loop_footer_branch
      %11 = sbr.rel target = $region3
    $region8: #{tpu_custom_call.1} parent=1 // loop_exit
      _
    %373 = vsyncpa [#allocation3], 1
    %s374 = scalar_lea.sflag [#allocation3], 1
    %375 = vsyncpa %s374, 1

</llo_original>
